<compile_context>
chip_gen: v5e
topology: v5e:2x2
jax: 0.10.0
libtpu: 0.0.40
codegen_flags: <defaults>
</compile_context>

<pallas_src>
import functools
import math

import jax
import jax.numpy as jnp
from jax.experimental import pallas as pl
from jax.experimental.pallas import tpu as pltpu


def _as_i32(v):
    """Reinterpret an unsigned 32-bit constant as a signed int32 Python int."""
    v &= 0xFFFFFFFF
    return v - (1 << 32) if v >= (1 << 31) else v


_MIX1 = _as_i32(0x85EBCA6B)   # murmur3 fmix32 constants
_MIX2 = _as_i32(0xC2B2AE35)


# ----------------------------------------------------------------------------
# Kernel
# ----------------------------------------------------------------------------
def _pe_dropout_kernel(seed_ref, x_ref, pe_ref, o_ref, *, dropout_p, training):
    # x_ref : (TS, B, D) in VMEM     pe_ref : (TS, D) in VMEM
    # o_ref : (TS, B, D) in VMEM     seed_ref: (1,) int32 in SMEM (scalar prefetch)
    x = x_ref[...].astype(jnp.float32)
    pe = pe_ref[...].astype(jnp.float32)
    y = x + pe[:, None, :]                       # broadcast over the batch axis

    if training and dropout_p > 0.0:
        ts, b, d = x_ref.shape
        row0 = pl.program_id(0) * ts             # global sequence offset of tile
        # Global element index -> hash counter (mask is tiling-invariant).
        i_s = jax.lax.broadcasted_iota(jnp.int32, (ts, b, d), 0) + row0
        i_b = jax.lax.broadcasted_iota(jnp.int32, (ts, b, d), 1)
        i_d = jax.lax.broadcasted_iota(jnp.int32, (ts, b, d), 2)
        h = i_s * jnp.int32(b * d) + i_b * jnp.int32(d) + i_d
        h = h ^ seed_ref[0]
        # murmur3 fmix32; logical right shifts emulated as arithmetic shift +
        # mask so everything stays plain int32 VPU ops (portable + cheap).
        h = h ^ ((h >> 16) & 0xFFFF)
        h = h * _MIX1
        h = h ^ ((h >> 13) & 0x7FFFF)
        h = h * _MIX2
        h = h ^ ((h >> 16) & 0xFFFF)
        r24 = (h >> 8) & 0xFFFFFF                # uniform integer in [0, 2**24)
        thresh = int(round(float(dropout_p) * (1 << 24)))
        keep = r24 >= thresh                     # keep with prob (1 - p)
        scale = jnp.float32(1.0 / (1.0 - float(dropout_p)))
        # Single multiply: y * (scale or 0) -- integer-threshold dropout.
        y = y * jnp.where(keep, scale, jnp.float32(0.0))

    o_ref[...] = y.astype(o_ref.dtype)


# ----------------------------------------------------------------------------
# Tile-size selection: keep the double-buffered working set ~24 MiB so it fits
# comfortably on v7x (64 MiB physical VMEM) and under a 48 MiB scoped limit,
# while still being large enough to amortize per-grid-step overhead.
# ----------------------------------------------------------------------------
def _pick_tile_rows(S, B, D, itemsize, working_set_budget=24 * 1024 * 1024):
    # Per pipelined grid step (2 buffers): 2 * (x_tile + out_tile + pe_tile)
    per_row = (2 * B * D + D) * itemsize
    ts = working_set_budget // (2 * per_row)
    ts = (ts // 8) * 8                  # keep the (TS, D) pe block 8-row aligned
    ts = max(ts, min(8, S))             # never drop below 8 rows (or all of S)
    return int(min(ts, S))


# ----------------------------------------------------------------------------
# Wrapper
# ----------------------------------------------------------------------------
def positional_encoding_forward(x, pe, *, dropout_p=0.1, training=False, seed=0):
    """x: (S, B, D);  pe: (max_len, 1, D) or (max_len, D)."""
    S, B, D = x.shape
    pe2d = pe[:S, 0, :] if pe.ndim == 3 else pe[:S]      # (S, D), lane-dense
    pe2d = pe2d.astype(jnp.float32)

    itemsize = jnp.dtype(x.dtype).itemsize
    ts = _pick_tile_rows(S, B, D, itemsize)
    num_tiles = pl.cdiv(S, ts)

    seed_arr = jnp.asarray([seed], dtype=jnp.int32)
    kernel = functools.partial(
        _pe_dropout_kernel, dropout_p=float(dropout_p), training=bool(training)
    )

    grid_spec = pltpu.PrefetchScalarGridSpec(
        num_scalar_prefetch=1,                    # seed lands in SMEM
        grid=(num_tiles,),
        in_specs=[
            pl.BlockSpec((ts, B, D), lambda i, seed: (i, 0, 0)),   # x tile
            pl.BlockSpec((ts, D), lambda i, seed: (i, 0)),         # pe tile
        ],
        out_specs=pl.BlockSpec((ts, B, D), lambda i, seed: (i, 0, 0)),
    )

    # TODO(synk): for real transformer shapes prefer B a multiple of 8 and D a
    # multiple of 128 (lane-dense blocks); the toy demo shape is kept as-is.
    return pl.pallas_call(
        kernel,
        out_shape=jax.ShapeDtypeStruct(x.shape, x.dtype),
        grid_spec=grid_spec,
        compiler_params=pltpu.CompilerParams(
            dimension_semantics=("parallel",),     # seq tiles are independent
            vmem_limit_bytes=48 * 1024 * 1024,     # > v5e's 16 MiB default, < v7x physical
        ),
    )(seed_arr, x, pe2d)


# ----------------------------------------------------------------------------
# Parameter (buffer) construction — mirrors the PyTorch __init__ exactly.
# ----------------------------------------------------------------------------
def build_pe(d_model, max_len=5000):
    position = jnp.arange(0, max_len, dtype=jnp.float32)[:, None]            # (L, 1)
    div_term = jnp.exp(
        jnp.arange(0, d_model, 2, dtype=jnp.float32) * (-math.log(10000.0) / d_model)
    )                                                                         # (D/2,)
    pe = jnp.zeros((max_len, d_model), dtype=jnp.float32)
    pe = pe.at[:, 0::2].set(jnp.sin(position * div_term))
    pe = pe.at[:, 1::2].set(jnp.cos(position * div_term))
    return pe[:, None, :]                                                     # (L, 1, D)


if __name__ == "__main__":
    # Small shapes implied by the forward: (seq_len, batch, d_model)
    seq_len, batch, d_model = 8, 2, 32
    max_len = 64

    key = jax.random.PRNGKey(0)
    x = jax.random.normal(key, (seq_len, batch, d_model), dtype=jnp.float32)
    pe = build_pe(d_model, max_len=max_len)

    ref = x + pe[:seq_len]                                   # reference add

    # Eval-mode pass (dropout is identity) — must match the reference exactly.
    out_eval = positional_encoding_forward(x, pe, dropout_p=0.1, training=False)
    out_eval = jax.block_until_ready(out_eval)
    assert out_eval.shape == x.shape
    assert jnp.allclose(out_eval, ref, atol=1e-6), "mismatch vs reference add"

    # Training-mode pass exercises the in-kernel dropout path.
    p = 0.1
    out_train = positional_encoding_forward(
        x, pe, dropout_p=p, training=True, seed=1234
    )
    out_train = jax.block_until_ready(out_train)
    assert out_train.shape == x.shape
    scaled = ref / (1.0 - p)
    ok = jnp.isclose(out_train, scaled, rtol=1e-5, atol=1e-5) | (out_train == 0.0)
    assert bool(jnp.all(ok)), "training output not consistent with inverted dropout"
    n_zero = int(jnp.sum(out_train == 0.0))
    assert 0 < n_zero < out_train.size, "dropout mask looks degenerate"

    print("KERNEL_OK")
</pallas_src>

<mosaic_0001>
module attributes {stable_mosaic.version = 11 : i64} {
  func.func @_pe_dropout_kernel(%arg0: i32, %arg1: memref<1xi32, #tpu.memory_space<smem>>, %arg2: memref<8x2x32xf32, #tpu.memory_space<vmem>>, %arg3: memref<8x32xf32, #tpu.memory_space<vmem>>, %arg4: memref<8x2x32xf32, #tpu.memory_space<vmem>>) attributes {dimension_semantics = [#tpu.dimension_semantics<parallel>], iteration_bounds = array<i64: 1>, scalar_prefetch = 1 : i64, scratch_operands = 0 : i64, tpu.core_type = #tpu.core_type<tc>, window_params = [{transform_indices = @transform_0, window_bounds = array<i64: 8, 2, 32>}, {transform_indices = @transform_1, window_bounds = array<i64: 8, 32>}, {transform_indices = @transform_2, window_bounds = array<i64: 8, 2, 32>}]} {
    %c0 = arith.constant 0 : index
    %c0_0 = arith.constant 0 : index
    %c0_1 = arith.constant 0 : index
    %0 = vector.load %arg2[%c0, %c0_0, %c0_1] : memref<8x2x32xf32, #tpu.memory_space<vmem>>, vector<8x2x32xf32>
    %c0_2 = arith.constant 0 : index
    %c0_3 = arith.constant 0 : index
    %1 = vector.load %arg3[%c0_2, %c0_3] : memref<8x32xf32, #tpu.memory_space<vmem>>, vector<8x32xf32>
    %2 = vector.shape_cast %1 : vector<8x32xf32> to vector<8x1x32xf32>
    %3 = vector.broadcast %2 : vector<8x1x32xf32> to vector<8x2x32xf32>
    %4 = arith.addf %0, %3 : vector<8x2x32xf32>
    %c0_4 = arith.constant 0 : index
    %c0_5 = arith.constant 0 : index
    %c0_6 = arith.constant 0 : index
    %5 = vector.load %arg4[%c0_4, %c0_5, %c0_6] : memref<8x2x32xf32, #tpu.memory_space<vmem>>, vector<8x2x32xf32>
    tpu.vector_store %arg4[%c0_4, %c0_5, %c0_6], %4 {strides = array<i32>} : memref<8x2x32xf32, #tpu.memory_space<vmem>>, vector<8x2x32xf32>,
    return
  }
  func.func @transform_0(%arg0: i32, %arg1: memref<1xi32, #tpu.memory_space<smem>>) -> (i32, i32, i32) {
    %c0_i32 = arith.constant 0 : i32
    %c0_i32_0 = arith.constant 0 : i32
    %c0_i32_1 = arith.constant 0 : i32
    return %arg0, %c0_i32, %c0_i32_0 : i32, i32, i32
  }
  func.func @transform_1(%arg0: i32, %arg1: memref<1xi32, #tpu.memory_space<smem>>) -> (i32, i32) {
    %c0_i32 = arith.constant 0 : i32
    %c0_i32_0 = arith.constant 0 : i32
    return %arg0, %c0_i32 : i32, i32
  }
  func.func @transform_2(%arg0: i32, %arg1: memref<1xi32, #tpu.memory_space<smem>>) -> (i32, i32, i32) {
    %c0_i32 = arith.constant 0 : i32
    %c0_i32_0 = arith.constant 0 : i32
    %c0_i32_1 = arith.constant 0 : i32
    return %arg0, %c0_i32, %c0_i32_0 : i32, i32, i32
  }
}

</mosaic_0001>

<llo_original>
// kernel: tpu_custom_call.1
$region0: #{tpu_custom_call.1}
  #allocation0 [shape = 'u32[]', space=smem, size = 0x4, offset = 0x4, fixed_abs, tag = 'smem constant byte address 0x4 - core index']
  #allocation1 [shape = 'u32[72,128]{1,0:T(1,128)}', space=vmem, size = 0x9000, scoped, tag = 'internal scratch']
  #allocation2 [shape = 's32[1]{0}', space=sflag, size = 0x4, scoped, tag = 'scoped memory for tpu_custom_call.1']
  #allocation3 [shape = 's32[1]{0:T(128)S(6)}', space=smem, size = 0x200, scoped, tag = 'prefetched SMEM operand 0']
  %s0 = inlined_call_operand.<no memory space> [shape: s32[1], index: 0, kind: input, shape index: {}]
  %s1 = inlined_call_operand.hbm [shape: f32[8,2,32], index: 1, kind: input, shape index: {}]
  %s2 = inlined_call_operand.hbm [shape: f32[8,32], index: 2, kind: input, shape index: {}]
  %s3 = inlined_call_operand.hbm [shape: f32[8,2,32], index: 3, kind: output, shape index: {}]
  %s4 = sld [smem:[#allocation0]]
  $region26: #{tpu_custom_call.1} parent=0
    _
  %s6 = ssub.s32 1, %s4
  %s7 = scalar_select 0, %s6, %s4
  %8 = sst [smem:[#allocation3]] %s0
  $region1: #{tpu_custom_call.1} parent=0
    #allocation4 [shape = 'u8[8192]{0}', space=vmem, size = 0x2000, scoped, tag = 'input window, operand 1, single buffered']
    #allocation5 [shape = 's32[1]{0}', space=sflag, size = 0x4, scoped, tag = 'scoped memory for tpu_custom_call.1']
    #allocation6 [shape = 's32[1]{0}', space=sflag, size = 0x4, scoped, tag = 'scoped memory for tpu_custom_call.1']
    #allocation7 [shape = 'u8[4096]{0}', space=vmem, size = 0x1000, scoped, tag = 'input window, operand 2, single buffered']
    #allocation8 [shape = 's32[1]{0}', space=sflag, size = 0x4, scoped, tag = 'scoped memory for tpu_custom_call.1']
    #allocation9 [shape = 'u8[8192]{0}', space=vmem, size = 0x2000, scoped, tag = 'output window, operand 0, single buffered']
    %9 = vsyncpa [#allocation5], 0
    %10 = vsyncpa [#allocation8], 0
    %11 = vsyncpa [#allocation6], 0
    // Predicated region
    $region2: #{tpu_custom_call.1} parent=1 // pred_check
      _
    $region3: #{tpu_custom_call.1} parent=1 // pred_check_branch
      %13 = sbr.rel (0) target = $region5
    $region4: #{tpu_custom_call.1} parent=1 // pred_region
      %15 = vsyncadd [#allocation5], 0
      %s16 = sshll.u32 %s1, 4
      %s17 = int_to_ptr.hbm [resolvable:$true] %s16
      %s18 = sshll.u32 [#allocation4], 4
      %s19 = int_to_ptr.vmem [resolvable:$true] %s18
      %24 = dma.hbm_to_vmem [thread:$0]  %s17, 256, %s19, [#allocation5], 32, 32, 2
    $region5: #{tpu_custom_call.1} parent=1 // pred_fallthru
      _
    // Predicated region
    $region6: #{tpu_custom_call.1} parent=1 // pred_check
      _
    $region7: #{tpu_custom_call.1} parent=1 // pred_check_branch
      %26 = sbr.rel (0) target = $region9
    $region8: #{tpu_custom_call.1} parent=1 // pred_region
      %28 = vsyncadd [#allocation8], 0
      %s30 = sshll.u32 %s2, 4
      %s31 = int_to_ptr.hbm [resolvable:$true] %s30
      %s32 = sshll.u32 [#allocation7], 4
      %s33 = int_to_ptr.vmem [resolvable:$true] %s32
      %35 = dma.hbm_to_vmem [thread:$0]  %s31, 128, %s33, [#allocation8]
    $region9: #{tpu_custom_call.1} parent=1 // pred_fallthru
      _
    // Predicated region
    $region10: #{tpu_custom_call.1} parent=1 // pred_check
      _
    $region11: #{tpu_custom_call.1} parent=1 // pred_check_branch
      %37 = sbr.rel (0) target = $region13
    $region12: #{tpu_custom_call.1} parent=1 // pred_region
      %39 = dma.done [#allocation5], 256
    $region13: #{tpu_custom_call.1} parent=1 // pred_fallthru
      _
    // Predicated region
    $region14: #{tpu_custom_call.1} parent=1 // pred_check
      _
    $region15: #{tpu_custom_call.1} parent=1 // pred_check_branch
      %41 = sbr.rel (0) target = $region17
    $region16: #{tpu_custom_call.1} parent=1 // pred_region
      %43 = dma.done [#allocation8], 128
    $region17: #{tpu_custom_call.1} parent=1 // pred_fallthru
      _
    %v44 = vld [vmem:[#allocation4] sm:$0x3]
    %v45 = vld [vmem:[#allocation4 + $0x2] sm:$0x3]
    %v46 = vld [vmem:[#allocation4 + $0x4] sm:$0x3]
    %v47 = vld [vmem:[#allocation4 + $0x6] sm:$0x3]
    %v48 = vld [vmem:[#allocation4 + $0x8] sm:$0x3]
    %v49 = vld [vmem:[#allocation4 + $0xa] sm:$0x3]
    %v50 = vld [vmem:[#allocation4 + $0xc] sm:$0x3]
    %v51 = vld [vmem:[#allocation4 + $0xe] sm:$0x3]
    %v52 = vld [vmem:[#allocation7] sm:$0xff]
    %v54 = vrot.slane %v52, 1
    %v55 = vrot.slane %v52, 2
    %v56 = vrot.slane %v52, 3
    %v57 = vrot.slane %v52, 4
    %v58 = vrot.slane %v52, 5
    %v59 = vrot.slane %v52, 6
    %v60 = vrot.slane %v52, 7
    %v61 = vperm.slane %v52, 0
    %v62 = vperm.slane %v54, 0
    %v63 = vperm.slane %v55, 0
    %v64 = vperm.slane %v56, 0
    %v65 = vperm.slane %v57, 0
    %v66 = vperm.slane %v58, 0
    %v67 = vperm.slane %v59, 0
    %v68 = vperm.slane %v60, 0
    %v77 = vadd.f32 %v44, %v61
    %v78 = vadd.f32 %v45, %v62
    %v79 = vadd.f32 %v46, %v63
    %v80 = vadd.f32 %v47, %v64
    %v81 = vadd.f32 %v48, %v65
    %v82 = vadd.f32 %v49, %v66
    %v83 = vadd.f32 %v50, %v67
    %v84 = vadd.f32 %v51, %v68
    %vm85 = vcmask 254976
    %86 = vst.msk [vmem:[#allocation9] sm:$0x3] %vm85, %v77
    %87 = vst.msk [vmem:[#allocation9 + $0x2] sm:$0x3] %vm85, %v78
    %88 = vst.msk [vmem:[#allocation9 + $0x4] sm:$0x3] %vm85, %v79
    %89 = vst.msk [vmem:[#allocation9 + $0x6] sm:$0x3] %vm85, %v80
    %90 = vst.msk [vmem:[#allocation9 + $0x8] sm:$0x3] %vm85, %v81
    %91 = vst.msk [vmem:[#allocation9 + $0xa] sm:$0x3] %vm85, %v82
    %92 = vst.msk [vmem:[#allocation9 + $0xc] sm:$0x3] %vm85, %v83
    %93 = vst.msk [vmem:[#allocation9 + $0xe] sm:$0x3] %vm85, %v84
    // Predicated region
    $region18: #{tpu_custom_call.1} parent=1 // pred_check
      _
    $region19: #{tpu_custom_call.1} parent=1 // pred_check_branch
      %95 = sbr.rel (0) target = $region21
    $region20: #{tpu_custom_call.1} parent=1 // pred_region
      %97 = vsyncadd [#allocation6], 0
      %s98 = sshll.u32 [#allocation9], 4
      %s99 = int_to_ptr.vmem [resolvable:$true] %s98
      %s100 = sshll.u32 %s3, 4
      %s101 = int_to_ptr.hbm [resolvable:$true] %s100
      %106 = dma.vmem_to_hbm [thread:$0]  %s99, 256, %s101, [#allocation6], 32, 32, 2
    $region21: #{tpu_custom_call.1} parent=1 // pred_fallthru
      _
    // Predicated region
    $region22: #{tpu_custom_call.1} parent=1 // pred_check
      _
    $region23: #{tpu_custom_call.1} parent=1 // pred_check_branch
      %108 = sbr.rel (0) target = $region25
    $region24: #{tpu_custom_call.1} parent=1 // pred_region
      %110 = dma.done [#allocation6], 256
    $region25: #{tpu_custom_call.1} parent=1 // pred_fallthru
      _
    %111 = vsyncpa [#allocation5], 1
    %112 = vsyncpa [#allocation8], 1
    %113 = vsyncpa [#allocation6], 1

</llo_original>
